<compile_context>
chip_gen: v7x
topology: tpu7x:2x2x1
jax: 0.10.0
libtpu: 0.0.40
codegen_flags: <defaults>
</compile_context>

<pallas_src>
import functools

import jax
import jax.numpy as jnp
from jax.experimental import pallas as pl
from jax.experimental.pallas import tpu as pltpu


def _round_up(x, m):
    return (x + m - 1) // m * m


def _mf_forward_kernel(P, lam, u_ref, it_ref, pred_ref, loss_ref):
    """One (batch b, POI-tile pt) step.

    u_ref    : (1, 1, D)     gathered user row
    it_ref   : (1, D, TP)    gathered+transposed POI rows (zero-padded cols)
    pred_ref : (1, 1, TP)    lane-dense prediction tile
    loss_ref : (1, 1, 1)     per-batch loss partial (revisited across pt)
    """
    pt = pl.program_id(1)
    n_pt = pl.num_programs(1)

    u = u_ref[0]          # (1, D)
    it = it_ref[0]        # (D, TP)

    # predict: MXU contraction over D -> lane-dense (1, TP) tile.
    pred = jnp.dot(u, it, preferred_element_type=jnp.float32)
    pred_ref[...] = pred.reshape(pred_ref.shape)

    # regularize: POI term over this tile (zero-padded columns contribute 0);
    # user term counted once per POI (== P times per batch), added at pt == 0.
    @pl.when(pt == 0)
    def _init():
        loss_ref[...] = jnp.zeros_like(loss_ref) + jnp.float32(P) * jnp.sum(u * u)

    loss_ref[...] = loss_ref[...] + jnp.sum(it * it)

    @pl.when(pt == n_pt - 1)
    def _finalize():
        loss_ref[...] = loss_ref[...] * jnp.float32(lam)


def mf_forward(u_embeds, i_embeds, users, pois, lam):
    """users: (B, 1) int, pois: (B, P) int; embeddings float32."""
    B, P = pois.shape
    _, D = u_embeds.shape

    TP = min(512, _round_up(P, 128))     # lane-dense POI tile (multiple of 128)
    P_pad = _round_up(P, TP)
    n_pt = P_pad // TP

    # XLA-side gathers: one contiguous slab each, streamed into the kernel
    # with rectangular BlockSpec tiles (no scattered per-row DMAs in-kernel).
    ue = u_embeds[users[:, 0]][:, None, :]                        # (B, 1, D)
    ie = i_embeds[pois]                                           # (B, P, D)
    ie = jnp.pad(ie, ((0, 0), (0, P_pad - P), (0, 0)))            # zero pad -> 0 contribution
    ie_t = jnp.swapaxes(ie, 1, 2)                                 # (B, D, P_pad)

    pred_pad, loss_b = pl.pallas_call(
        functools.partial(_mf_forward_kernel, P, float(lam)),
        out_shape=(
            jax.ShapeDtypeStruct((B, 1, P_pad), jnp.float32),
            jax.ShapeDtypeStruct((B, 1, 1), jnp.float32),
        ),
        grid=(B, n_pt),
        in_specs=[
            pl.BlockSpec((1, 1, D), lambda b, pt: (b, 0, 0)),     # user row
            pl.BlockSpec((1, D, TP), lambda b, pt: (b, 0, pt)),   # POI tile
        ],
        out_specs=(
            pl.BlockSpec((1, 1, TP), lambda b, pt: (b, 0, pt)),   # pred tile
            pl.BlockSpec((1, 1, 1), lambda b, pt: (b, 0, 0)),     # loss partial
        ),
        compiler_params=pltpu.CompilerParams(
            dimension_semantics=("parallel", "arbitrary"),
        ),
    )(ue, ie_t)

    pred = pred_pad[:, 0, :P]          # drop lane padding
    loss = jnp.sum(loss_b)             # lam already applied in-kernel
    return pred, loss


if __name__ == "__main__":
    # Deterministic synthetic parameters (xavier-normal, like nn.init.xavier_normal_).
    num_user, num_item, emb_dim = 16, 32, 32
    lam = 0.01
    B, P = 2, 8

    key = jax.random.PRNGKey(0)
    ku, ki, kus, kps = jax.random.split(key, 4)

    std_u = (2.0 / (num_user + emb_dim)) ** 0.5
    std_i = (2.0 / (num_item + emb_dim)) ** 0.5
    u_embeds = std_u * jax.random.normal(ku, (num_user, emb_dim), dtype=jnp.float32)
    i_embeds = std_i * jax.random.normal(ki, (num_item, emb_dim), dtype=jnp.float32)

    users = jax.random.randint(kus, (B, 1), 0, num_user, dtype=jnp.int32)
    pois = jax.random.randint(kps, (B, P), 0, num_item, dtype=jnp.int32)

    pred, loss = mf_forward(u_embeds, i_embeds, users, pois, lam)
    jax.block_until_ready((pred, loss))

    # Reference check in plain JAX (mirrors the PyTorch forward).
    ue_ref = jnp.broadcast_to(u_embeds[users[:, 0]][:, None, :], (B, P, emb_dim))
    ie_ref = i_embeds[pois]
    pred_ref = jnp.sum(ue_ref * ie_ref, axis=2)
    loss_ref = lam * (jnp.sum(ue_ref ** 2) + jnp.sum(ie_ref ** 2))
    assert jnp.allclose(pred, pred_ref, atol=1e-5), "pred mismatch"
    assert jnp.allclose(loss, loss_ref, atol=1e-5), "loss mismatch"

    print("KERNEL_OK")
</pallas_src>

<mosaic_0001>
module attributes {stable_mosaic.version = 11 : i64} {
  func.func @_mf_forward_kernel(%arg0: i32, %arg1: i32, %arg2: memref<1x1x32xf32, #tpu.memory_space<vmem>>, %arg3: memref<1x32x128xf32, #tpu.memory_space<vmem>>, %arg4: memref<1x1x128xf32, #tpu.memory_space<vmem>>, %arg5: memref<1x1x1xf32, #tpu.memory_space<vmem>>) attributes {dimension_semantics = [#tpu.dimension_semantics<parallel>, #tpu.dimension_semantics<arbitrary>], iteration_bounds = array<i64: 2, 1>, scalar_prefetch = 0 : i64, scratch_operands = 0 : i64, tpu.core_type = #tpu.core_type<tc>, window_params = [{transform_indices = @transform_0, window_bounds = array<i64: 1, 1, 32>}, {transform_indices = @transform_1, window_bounds = array<i64: 1, 32, 128>}, {transform_indices = @transform_2, window_bounds = array<i64: 1, 1, 128>}, {transform_indices = @transform_3, window_bounds = array<i64: 1, 1, 1>}]} {
    %c0 = arith.constant 0 : index
    %c0_0 = arith.constant 0 : index
    %c0_1 = arith.constant 0 : index
    %0 = vector.load %arg2[%c0, %c0_0, %c0_1] : memref<1x1x32xf32, #tpu.memory_space<vmem>>, vector<1x1x32xf32>
    %1 = vector.shape_cast %0 : vector<1x1x32xf32> to vector<1x32xf32>
    %c0_2 = arith.constant 0 : index
    %c0_3 = arith.constant 0 : index
    %c0_4 = arith.constant 0 : index
    %2 = vector.load %arg3[%c0_2, %c0_3, %c0_4] : memref<1x32x128xf32, #tpu.memory_space<vmem>>, vector<1x32x128xf32>
    %3 = vector.shape_cast %2 : vector<1x32x128xf32> to vector<32x128xf32>
    %cst = arith.constant dense<0.000000e+00> : vector<1x128xf32>
    %4 = tpu.matmul %1, %3, %cst {dimension_numbers = #tpu.dot_dimension_numbers<[1], [0], [0], [1], [0, 0, 1, 1], [], []>} : vector<1x32xf32>, vector<32x128xf32>, vector<1x128xf32> -> vector<1x128xf32>
    %5 = vector.shape_cast %4 : vector<1x128xf32> to vector<1x1x128xf32>
    %c0_5 = arith.constant 0 : index
    %c0_6 = arith.constant 0 : index
    %c0_7 = arith.constant 0 : index
    %6 = vector.load %arg4[%c0_5, %c0_6, %c0_7] : memref<1x1x128xf32, #tpu.memory_space<vmem>>, vector<1x1x128xf32>
    tpu.vector_store %arg4[%c0_5, %c0_6, %c0_7], %5 {strides = array<i32>} : memref<1x1x128xf32, #tpu.memory_space<vmem>>, vector<1x1x128xf32>,
    %c0_i32 = arith.constant 0 : i32
    %7 = arith.cmpi eq, %arg1, %c0_i32 : i32
    %8 = arith.extui %7 : i1 to i32
    %c0_i32_8 = arith.constant 0 : i32
    %9 = arith.cmpi ne, %8, %c0_i32_8 : i32
    scf.if %9 {
      %cst_18 = arith.constant 0.000000e+00 : f32
      %22 = vector.broadcast %cst_18 : f32 to vector<1x1x1xf32>
      %23 = arith.mulf %1, %1 : vector<1x32xf32>
      %24 = vector.shape_cast %23 : vector<1x32xf32> to vector<1x1x32xf32>
      %cst_19 = arith.constant dense<0.000000e+00> : vector<1xf32>
      %25 = vector.multi_reduction <add>, %24, %cst_19 [1, 2] : vector<1x1x32xf32> to vector<1xf32>
      %26 = vector.shape_cast %25 : vector<1xf32> to vector<1x1x1xf32>
      %27 = vector.extract %26[0, 0, 0] : f32 from vector<1x1x1xf32>
      %cst_20 = arith.constant 8.000000e+00 : f32
      %28 = arith.mulf %cst_20, %27 : f32
      %29 = vector.broadcast %28 : f32 to vector<1x1x1xf32>
      %30 = arith.addf %22, %29 : vector<1x1x1xf32>
      %c0_21 = arith.constant 0 : index
      %c0_22 = arith.constant 0 : index
      %c0_23 = arith.constant 0 : index
      %31 = vector.load %arg5[%c0_21, %c0_22, %c0_23] : memref<1x1x1xf32, #tpu.memory_space<vmem>>, vector<1x1x1xf32>
      tpu.vector_store %arg5[%c0_21, %c0_22, %c0_23], %30 {strides = array<i32>} : memref<1x1x1xf32, #tpu.memory_space<vmem>>, vector<1x1x1xf32>,
    } else {
    }
    %c0_9 = arith.constant 0 : index
    %c0_10 = arith.constant 0 : index
    %c0_11 = arith.constant 0 : index
    %10 = vector.load %arg5[%c0_9, %c0_10, %c0_11] : memref<1x1x1xf32, #tpu.memory_space<vmem>>, vector<1x1x1xf32>
    %11 = arith.mulf %3, %3 : vector<32x128xf32>
    %12 = vector.shape_cast %11 : vector<32x128xf32> to vector<1x32x128xf32>
    %cst_12 = arith.constant dense<0.000000e+00> : vector<1xf32>
    %13 = vector.multi_reduction <add>, %12, %cst_12 [1, 2] : vector<1x32x128xf32> to vector<1xf32>
    %14 = vector.shape_cast %13 : vector<1xf32> to vector<1x1x1xf32>
    %15 = vector.extract %14[0, 0, 0] : f32 from vector<1x1x1xf32>
    %16 = vector.broadcast %15 : f32 to vector<1x1x1xf32>
    %17 = arith.addf %10, %16 : vector<1x1x1xf32>
    %c0_13 = arith.constant 0 : index
    %c0_14 = arith.constant 0 : index
    %c0_15 = arith.constant 0 : index
    %18 = vector.load %arg5[%c0_13, %c0_14, %c0_15] : memref<1x1x1xf32, #tpu.memory_space<vmem>>, vector<1x1x1xf32>
    tpu.vector_store %arg5[%c0_13, %c0_14, %c0_15], %17 {strides = array<i32>} : memref<1x1x1xf32, #tpu.memory_space<vmem>>, vector<1x1x1xf32>,
    %c0_i32_16 = arith.constant 0 : i32
    %19 = arith.cmpi eq, %arg1, %c0_i32_16 : i32
    %20 = arith.extui %19 : i1 to i32
    %c0_i32_17 = arith.constant 0 : i32
    %21 = arith.cmpi ne, %20, %c0_i32_17 : i32
    scf.if %21 {
      %c0_18 = arith.constant 0 : index
      %c0_19 = arith.constant 0 : index
      %c0_20 = arith.constant 0 : index
      %22 = vector.load %arg5[%c0_18, %c0_19, %c0_20] : memref<1x1x1xf32, #tpu.memory_space<vmem>>, vector<1x1x1xf32>
      %cst_21 = arith.constant 0.00999999977 : f32
      %23 = vector.broadcast %cst_21 : f32 to vector<1x1x1xf32>
      %24 = arith.mulf %22, %23 : vector<1x1x1xf32>
      %c0_22 = arith.constant 0 : index
      %c0_23 = arith.constant 0 : index
      %c0_24 = arith.constant 0 : index
      %25 = vector.load %arg5[%c0_22, %c0_23, %c0_24] : memref<1x1x1xf32, #tpu.memory_space<vmem>>, vector<1x1x1xf32>
      tpu.vector_store %arg5[%c0_22, %c0_23, %c0_24], %24 {strides = array<i32>} : memref<1x1x1xf32, #tpu.memory_space<vmem>>, vector<1x1x1xf32>,
    } else {
    }
    return
  }
  func.func @transform_0(%arg0: i32, %arg1: i32) -> (i32, i32, i32) {
    %c0_i32 = arith.constant 0 : i32
    %c0_i32_0 = arith.constant 0 : i32
    %c0_i32_1 = arith.constant 0 : i32
    return %arg0, %c0_i32, %c0_i32_0 : i32, i32, i32
  }
  func.func @transform_1(%arg0: i32, %arg1: i32) -> (i32, i32, i32) {
    %c0_i32 = arith.constant 0 : i32
    %c0_i32_0 = arith.constant 0 : i32
    return %arg0, %c0_i32, %arg1 : i32, i32, i32
  }
  func.func @transform_2(%arg0: i32, %arg1: i32) -> (i32, i32, i32) {
    %c0_i32 = arith.constant 0 : i32
    %c0_i32_0 = arith.constant 0 : i32
    return %arg0, %c0_i32, %arg1 : i32, i32, i32
  }
  func.func @transform_3(%arg0: i32, %arg1: i32) -> (i32, i32, i32) {
    %c0_i32 = arith.constant 0 : i32
    %c0_i32_0 = arith.constant 0 : i32
    %c0_i32_1 = arith.constant 0 : i32
    return %arg0, %c0_i32, %c0_i32_0 : i32, i32, i32
  }
}

</mosaic_0001>

<llo_original>
// kernel: tpu_custom_call.1
$region0: #{tpu_custom_call.1}
  #allocation0 [shape = 'u32[]', space=smem, size = 0x4, offset = 0x4, fixed_abs, tag = 'smem constant byte address 0x4 - core index']
  #allocation1 [shape = 'u32[144,128]{1,0:T(1,128)}', space=vmem, size = 0x12000, scoped, tag = 'internal scratch']
  %s0 = inlined_call_operand.hbm [shape: f32[2,1,32], index: 0, kind: input, shape index: {}]
  %s1 = inlined_call_operand.hbm [shape: f32[2,32,128], index: 1, kind: input, shape index: {}]
  %s2 = inlined_call_operand.hbm [shape: f32[2,1,128], index: 2, kind: output, shape index: {0}]
  %s3 = inlined_call_operand.vmem [shape: f32[2,1,1], index: 3, kind: output, shape index: {1}]
  %4 = xla_tuple %s2, %s3
  %s5 = sld [smem:[#allocation0]]
  $region65: #{tpu_custom_call.1} parent=0
    _
  %s7 = ssub.s32 1, %s5
  %s8 = scalar_select 0, %s7, %s5
  $region1: #{tpu_custom_call.1} parent=0
    #allocation2 [shape = 'u8[1024]{0}', space=vmem, size = 0x400, scoped, tag = 'input window, operand 0']
    #allocation3 [shape = 's32[2]{0}', space=sflag, size = 0x8, scoped, tag = 'scoped memory for tpu_custom_call.1']
    #allocation4 [shape = 's32[2]{0}', space=sflag, size = 0x8, scoped, tag = 'scoped memory for tpu_custom_call.1']
    #allocation5 [shape = 'u8[32768]{0}', space=vmem, size = 0x8000, scoped, tag = 'input window, operand 1']
    #allocation6 [shape = 's32[2]{0}', space=sflag, size = 0x8, scoped, tag = 'scoped memory for tpu_custom_call.1']
    #allocation7 [shape = 'u8[1024]{0}', space=vmem, size = 0x400, scoped, tag = 'output window, operand 0']
    %9 = vsyncpa [#allocation3], 0
    %s10 = scalar_lea.sflag [#allocation3], 1
    %11 = vsyncpa %s10, 0
    %12 = vsyncpa [#allocation6], 0
    %s13 = scalar_lea.sflag [#allocation6], 1
    %14 = vsyncpa %s13, 0
    %15 = vsyncpa [#allocation4], 0
    %s16 = scalar_lea.sflag [#allocation4], 1
    %17 = vsyncpa %s16, 0
    loop: start=0, step=1, limit=4
    $region2: #{tpu_custom_call.1} parent=1 // loop_pre_header
      _
    $region3: #{tpu_custom_call.1} parent=1 // loop_header
      %s19 = sphi 0, %s23
      %p20 = scmp.ge.s32.totalorder %s19, 4
      %s26 = sphi 0, %s38
      %s27 = sphi 0, %s34
      %s28 = sphi 0, %s26
      %s29 = sphi 0, %s27
      %s30 = sphi 0, %s28
      %s31 = sphi 0, %s29
      %s41 = sphi 0, %s43
      %s44 = sphi 0, %s41
      %s45 = sphi 0, %s44
      %s61 = sphi 0, %s45
      %s69 = sphi 0, %s71
      %s72 = sphi 0, %s69
      %s73 = sphi 0, %s72
      %s89 = sphi 0, %s73
      %s97 = sphi 0, %s99
      %s100 = sphi 0, %s97
      %s101 = sphi 0, %s100
      %s117 = sphi 0, %s101
      %s123 = sphi 0, %s125
      %s126 = sphi 0, %s123
      %s127 = sphi 0, %s126
      %s143 = sphi 0, %s127
    $region4: #{tpu_custom_call.1} parent=1 // loop_header_branch
      %22 = sbr.rel (%p20) target = $region8
    $region5: #{tpu_custom_call.1} parent=1 // loop_body
      %s24 = ssub.s32 %s19, 1
      %s25 = ssub.s32 %s19, 2
      %s32 = sadd.s32 1, %s27
      %p33 = scmp.ge.s32.totalorder %s32, 1
      %s34 = scalar_select %p33, 0, %s32
      %s35 = sadd.s32 1, %s26
      %s36 = scalar_select %p33, %s35, %s26
      %p37 = scmp.ge.s32.totalorder %s36, 2
      %s38 = scalar_select %p37, 0, %s36
      %s39 = ssub.s32 %s26, %s38
      %p40 = scmp.eq.s32.totalorder %s39, 0
      %s42 = sadd.s32 %s41, 1
      %s43 = scalar_select %p40, %s41, %s42
      %p46 = pneg %p40
      %p47 = scmp.eq.s32.totalorder %s19, 1
      %p48 = por %p46, %p47
      %p49 = scmp.ne.s32.totalorder %s41, %s44
      %p50 = scmp.eq.s32.totalorder %s19, 0
      %p51 = por %p49, %p50
      %p52 = scmp.ne.s32.totalorder %s41, %s44
      %p53 = scmp.eq.s32.totalorder %s24, 1
      %p54 = por %p52, %p53
      %p55 = scmp.ne.s32.totalorder %s44, %s45
      %p56 = scmp.eq.s32.totalorder %s24, 0
      %p57 = por %p55, %p56
      %p58 = scmp.ne.s32.totalorder %s44, %s45
      %p59 = scmp.eq.s32.totalorder %s25, 1
      %p60 = por %p58, %p59
      %p62 = scmp.ne.s32.totalorder %s45, %s61
      %p63 = scmp.eq.s32.totalorder %s25, 0
      %p64 = por %p62, %p63
      %s65 = ssub.s32 %s26, %s38
      %s66 = ssub.s32 %s27, %s34
      %s67 = sor.u32 %s65, %s66
      %p68 = scmp.eq.s32.totalorder %s67, 0
      %s70 = sadd.s32 %s69, 1
      %s71 = scalar_select %p68, %s69, %s70
      %p74 = pneg %p68
      %p75 = scmp.eq.s32.totalorder %s19, 1
      %p76 = por %p74, %p75
      %p77 = scmp.ne.s32.totalorder %s69, %s72
      %p78 = scmp.eq.s32.totalorder %s19, 0
      %p79 = por %p77, %p78
      %p80 = scmp.ne.s32.totalorder %s69, %s72
      %p81 = scmp.eq.s32.totalorder %s24, 1
      %p82 = por %p80, %p81
      %p83 = scmp.ne.s32.totalorder %s72, %s73
      %p84 = scmp.eq.s32.totalorder %s24, 0
      %p85 = por %p83, %p84
      %p86 = scmp.ne.s32.totalorder %s72, %s73
      %p87 = scmp.eq.s32.totalorder %s25, 1
      %p88 = por %p86, %p87
      %p90 = scmp.ne.s32.totalorder %s73, %s89
      %p91 = scmp.eq.s32.totalorder %s25, 0
      %p92 = por %p90, %p91
      %s93 = ssub.s32 %s26, %s38
      %s94 = ssub.s32 %s27, %s34
      %s95 = sor.u32 %s93, %s94
      %p96 = scmp.eq.s32.totalorder %s95, 0
      %s98 = sadd.s32 %s97, 1
      %s99 = scalar_select %p96, %s97, %s98
      %p102 = pneg %p96
      %p103 = scmp.eq.s32.totalorder %s19, 1
      %p104 = por %p102, %p103
      %p105 = scmp.ne.s32.totalorder %s97, %s100
      %p106 = scmp.eq.s32.totalorder %s19, 0
      %p107 = por %p105, %p106
      %p108 = scmp.ne.s32.totalorder %s97, %s100
      %p109 = scmp.eq.s32.totalorder %s24, 1
      %p110 = por %p108, %p109
      %p111 = scmp.ne.s32.totalorder %s100, %s101
      %p112 = scmp.eq.s32.totalorder %s24, 0
      %p113 = por %p111, %p112
      %p114 = scmp.ne.s32.totalorder %s100, %s101
      %p115 = scmp.eq.s32.totalorder %s25, 1
      %p116 = por %p114, %p115
      %p118 = scmp.ne.s32.totalorder %s101, %s117
      %p119 = scmp.eq.s32.totalorder %s25, 0
      %p120 = por %p118, %p119
      %s121 = ssub.s32 %s26, %s38
      %p122 = scmp.eq.s32.totalorder %s121, 0
      %s124 = sadd.s32 %s123, 1
      %s125 = scalar_select %p122, %s123, %s124
      %p128 = pneg %p122
      %p129 = scmp.eq.s32.totalorder %s19, 1
      %p130 = por %p128, %p129
      %p131 = scmp.ne.s32.totalorder %s123, %s126
      %p132 = scmp.eq.s32.totalorder %s19, 0
      %p133 = por %p131, %p132
      %p134 = scmp.ne.s32.totalorder %s123, %s126
      %p135 = scmp.eq.s32.totalorder %s24, 1
      %p136 = por %p134, %p135
      %p137 = scmp.ne.s32.totalorder %s126, %s127
      %p138 = scmp.eq.s32.totalorder %s24, 0
      %p139 = por %p137, %p138
      %p140 = scmp.ne.s32.totalorder %s126, %s127
      %p141 = scmp.eq.s32.totalorder %s25, 1
      %p142 = por %p140, %p141
      %p144 = scmp.ne.s32.totalorder %s127, %s143
      %p145 = scmp.eq.s32.totalorder %s25, 0
      %p146 = por %p144, %p145
      %p147 = scmp.le.s32.totalorder 1, %s19
      %p148 = scmp.lt.s32.totalorder %s19, 3
      %p149 = pnand %p147, %p148
      %p150 = pneg %p149
      // Predicated region
      $region9: #{tpu_custom_call.1} parent=5 // pred_check
        _
      $region10: #{tpu_custom_call.1} parent=5 // pred_check_branch
        %152 = sbr.rel (%p149) target = $region12
      $region11: #{tpu_custom_call.1} parent=5 // pred_region
        %s153 = ssub.s32 %s19, 1
      $region12: #{tpu_custom_call.1} parent=5 // pred_fallthru
        _
      %p154 = scmp.lt.s32.totalorder %s19, 2
      // Predicated region
      $region13: #{tpu_custom_call.1} parent=5 // pred_check
        %p155 = pneg %p154
      $region14: #{tpu_custom_call.1} parent=5 // pred_check_branch
        %157 = sbr.rel (%p155) target = $region16
      $region15: #{tpu_custom_call.1} parent=5 // pred_region
        // Predicated region
        $region17: #{tpu_custom_call.1} parent=15 // pred_check
          %p158 = pneg %p51
        $region18: #{tpu_custom_call.1} parent=15 // pred_check_branch
          %160 = sbr.rel (%p158) target = $region20
        $region19: #{tpu_custom_call.1} parent=15 // pred_region
          %s161 = sand.u32 %s41, 1
          %s162 = scalar_lea.sflag [#allocation3], %s161
          %s163 = sand.u32 %s41, 1
          %s164 = scalar_lea.vmem [#allocation2], %s163
          %s166 = ssub.s32 16, 16
          %167 = vsyncadd %s162, %s166
          %s168 = smul.addr %s26, 16
          %s169 = scalar_lea.hbm %s0, %s168
          %s171 = sshll.u32 %s164, 4
          %s172 = int_to_ptr.vmem [resolvable:$true] %s171
          %174 = dma.hbm_to_vmem [thread:$0]  %s169, 16, %s172, %s162
        $region20: #{tpu_custom_call.1} parent=15 // pred_fallthru
          _
        // Predicated region
        $region21: #{tpu_custom_call.1} parent=15 // pred_check
          %p175 = pneg %p79
        $region22: #{tpu_custom_call.1} parent=15 // pred_check_branch
          %177 = sbr.rel (%p175) target = $region24
        $region23: #{tpu_custom_call.1} parent=15 // pred_region
          %s178 = sand.u32 %s69, 1
          %s179 = scalar_lea.sflag [#allocation6], %s178
          %s180 = sand.u32 %s69, 1
          %s181 = smul.addr %s180, 32
          %s182 = scalar_lea.vmem [#allocation5], %s181
          %s184 = ssub.s32 512, 512
          %185 = vsyncadd %s179, %s184
          %s186 = smul.addr %s26, 4
          %s187 = sadd.s32 %s27, %s186
          %s188 = smul.addr %s187, 128
          %s189 = scalar_lea.hbm %s1, %s188
          %s190 = sshll.u32 %s182, 4
          %s191 = int_to_ptr.vmem [resolvable:$true] %s190
          %196 = dma.hbm_to_vmem [thread:$0]  %s189, 512, %s191, %s179, 128, 128, 8
        $region24: #{tpu_custom_call.1} parent=15 // pred_fallthru
          _
      $region16: #{tpu_custom_call.1} parent=5 // pred_fallthru
        _
      %p197 = scmp.le.s32.totalorder 1, %s19
      %p198 = scmp.lt.s32.totalorder %s19, 3
      %p199 = pnand %p197, %p198
      %p200 = pneg %p199
      // Predicated region
      $region25: #{tpu_custom_call.1} parent=5 // pred_check
        _
      $region26: #{tpu_custom_call.1} parent=5 // pred_check_branch
        %202 = sbr.rel (%p199) target = $region28
      $region27: #{tpu_custom_call.1} parent=5 // pred_region
        %s203 = ssub.s32 %s19, 1
        %s204 = sand.u32 %s44, 1
        %s205 = scalar_lea.sflag [#allocation3], %s204
        %s206 = sand.u32 %s44, 1
        %s207 = scalar_lea.vmem [#allocation2], %s206
        // Predicated region
        $region29: #{tpu_custom_call.1} parent=27 // pred_check
          %p208 = pneg %p57
        $region30: #{tpu_custom_call.1} parent=27 // pred_check_branch
          %210 = sbr.rel (%p208) target = $region32
        $region31: #{tpu_custom_call.1} parent=27 // pred_region
          %211 = dma.done %s205, 16
        $region32: #{tpu_custom_call.1} parent=27 // pred_fallthru
          _
        %s212 = sand.u32 %s72, 1
        %s213 = scalar_lea.sflag [#allocation6], %s212
        %s214 = sand.u32 %s72, 1
        %s215 = smul.addr %s214, 32
        %s216 = scalar_lea.vmem [#allocation5], %s215
        // Predicated region
        $region33: #{tpu_custom_call.1} parent=27 // pred_check
          %p217 = pneg %p85
        $region34: #{tpu_custom_call.1} parent=27 // pred_check_branch
          %219 = sbr.rel (%p217) target = $region36
        $region35: #{tpu_custom_call.1} parent=27 // pred_region
          %220 = dma.done %s213, 512
        $region36: #{tpu_custom_call.1} parent=27 // pred_fallthru
          _
        %s221 = sand.u32 %s44, 1
        %s222 = scalar_lea.sflag [#allocation3], %s221
        %s223 = sand.u32 %s44, 1
        %s224 = scalar_lea.vmem [#allocation2], %s223
        %p225 = pneg %p57
        %p226 = pneg %p54
        %s227 = sand.u32 %s72, 1
        %s228 = scalar_lea.sflag [#allocation6], %s227
        %s229 = sand.u32 %s72, 1
        %s230 = smul.addr %s229, 32
        %s231 = scalar_lea.vmem [#allocation5], %s230
        %p232 = pneg %p85
        %p233 = pneg %p82
        %p234 = pneg %p113
        %p235 = pneg %p110
        %s236 = sand.u32 %s100, 1
        %s237 = scalar_lea.sflag [#allocation4], %s236
        %s238 = sand.u32 %s100, 1
        %s239 = scalar_lea.vmem [#allocation7], %s238
        %p240 = pneg %p139
        %p241 = pneg %p136
        %p242 = scmp.lt.s32.totalorder %s28, 1
        %s243 = scalar_select %p242, %s28, 1
        %s244 = scalar_lea.vmem %s3, %s243
        %p245 = scmp.lt.s32.totalorder %s28, 1
        %s246 = scalar_select %p245, %s28, 1
        %s247 = scalar_lea.vmem %s3, %s246
        %v248 = vld [vmem:[%s207] sm:$0x1]
        %v249 = vld [vmem:[%s216] sm:$0xff]
        %v250 = vld [vmem:[%s216 + $0x8] sm:$0xff]
        %v251 = vld [vmem:[%s216 + $0x10] sm:$0xff]
        %v252 = vld [vmem:[%s216 + $0x18] sm:$0xff]
        %vm253 = vcmask 261120
        %v255 = vsel %vm253, %v248, 0
        %257 = vmatprep.subr.mxu0 0.0
        %258 = vmatpush1.msra.mxu0 %v249
        %259 = vmatprep.subr.mxu0 0.0
        %260 = vmatpush1.msra.mxu0 %v250
        %261 = vmatprep.subr.mxu0 0.0
        %262 = vmatpush1.msra.mxu0 %v251
        %263 = vmatprep.subr.mxu0 0.0
        %264 = vmatpush1.msra.mxu0 %v252
        %265 = vmatprep.subr.mxu0 0.0
        %266 = vmatpush1.msra.mxu0 0.0
        %267 = vmatprep.subr.mxu0 0.0
        %268 = vmatpush1.msra.mxu0 0.0
        %269 = vmatprep.subr.mxu0 0.0
        %270 = vmatpush1.msra.mxu0 0.0
        %271 = vmatprep.subr.mxu0 0.0
        %272 = vmatpush1.msra.mxu0 0.0
        %273 = vmatprep.subr.mxu0 0.0
        %274 = vmatpush1.msra.mxu0 0.0
        %275 = vmatprep.subr.mxu0 0.0
        %276 = vmatpush1.msra.mxu0 0.0
        %277 = vmatprep.subr.mxu0 0.0
        %278 = vmatpush1.msra.mxu0 0.0
        %279 = vmatprep.subr.mxu0 0.0
        %280 = vmatpush1.msra.mxu0 0.0
        %281 = vmatprep.subr.mxu0 0.0
        %282 = vmatpush1.msra.mxu0 0.0
        %283 = vmatprep.subr.mxu0 0.0
        %284 = vmatpush1.msra.mxu0 0.0
        %285 = vmatprep.subr.mxu0 0.0
        %286 = vmatpush1.msra.mxu0 0.0
        %287 = vmatprep.subr.mxu0 0.0
        %288 = vmatpush1.msra.mxu0 0.0
        %289 = vmatprep.subr.mxu0 0.0
        %290 = vmatpush1.msra.mxu0 0.0
        %291 = vmatprep.subr.mxu0 0.0
        %292 = vmatpush1.msra.mxu0 0.0
        %293 = vmatprep.subr.mxu0 0.0
        %294 = vmatpush1.msra.mxu0 0.0
        %295 = vmatprep.subr.mxu0 0.0
        %296 = vmatpush1.msra.mxu0 0.0
        %297 = vmatprep.subr.mxu0 0.0
        %298 = vmatpush1.msra.mxu0 0.0
        %299 = vmatprep.subr.mxu0 0.0
        %300 = vmatpush1.msra.mxu0 0.0
        %301 = vmatprep.subr.mxu0 0.0
        %302 = vmatpush1.msra.mxu0 0.0
        %303 = vmatprep.subr.mxu0 0.0
        %304 = vmatpush1.msra.mxu0 0.0
        %305 = vmatprep.subr.mxu0 0.0
        %306 = vmatpush1.msra.mxu0 0.0
        %307 = vmatprep.subr.mxu0 0.0
        %308 = vmatpush1.msra.mxu0 0.0
        %309 = vmatprep.subr.mxu0 0.0
        %310 = vmatpush1.msra.mxu0 0.0
        %311 = vmatprep.subr.mxu0 0.0
        %312 = vmatpush1.msra.mxu0 0.0
        %313 = vmatprep.subr.mxu0 0.0
        %314 = vmatpush1.msra.mxu0 0.0
        %315 = vmatprep.subr.mxu0 0.0
        %316 = vmatpush1.msra.mxu0 0.0
        %317 = vmatprep.subr.mxu0 0.0
        %318 = vmatpush1.msra.mxu0 0.0
        %319 = vmatprep.subr.mxu0 0.0
        %320 = vmatpush1.msra.mxu0 0.0
        %321 = vmatprep.mubr.f32.mxu0 0.0
        %322 = vmatmul.mubr.f32.gmra.mrb[0].mxu0 %v255
        %v323 = vpop.f32.mrb[0].mxu0
        %v324 = vadd.f32 0.0, %v323
        %v325 = vpop.f32.mrb[0].mxu0
        %326 = vdwg.mxu0
        %327 = vst [vmem:[%s239] sm:$0x1] %v324
        %p328 = scmp.eq.s32.totalorder %s29, 0
        // Predicated region
        $region37: #{tpu_custom_call.1} parent=27 // pred_check
          %p329 = pneg %p328
        $region38: #{tpu_custom_call.1} parent=27 // pred_check_branch
          %331 = sbr.rel (%p329) target = $region40
        $region39: #{tpu_custom_call.1} parent=27 // pred_region
          %v332 = vmul.f32 %v248, %v248
          %vm333 = vcmask 253952
          %v334 = vsel %vm333, %v332, 0.0
          %335 = vadd.xlane.f32.xlu0 %v334
          %v336 = vpop.xlane.xlu0 %335
          %v337 = vrot.slane %v336, 4
          %v338 = vadd.f32 %v336, %v337
          %v339 = vrot.slane %v338, 2
          %v340 = vadd.f32 %v338, %v339
          %v341 = vrot.slane %v340, 1
          %v342 = vadd.f32 %v340, %v341
          %s343 = vtos %v342
          %s344 = smul.f32 %s343, 8.0
          %v345 = vstv %s344
          %v346 = vadd.f32 %v345, 0.0
          %vm347 = vcmask 0
          %348 = vst.msk [vmem:[%s247] sm:$0x1] %vm347, %v346
        $region40: #{tpu_custom_call.1} parent=27 // pred_fallthru
          _
        %v349 = vld [vmem:[%s247] sm:$0x1]
        %v350 = vmul.f32 %v249, %v249
        %v351 = vmul.f32 %v250, %v250
        %v352 = vmul.f32 %v251, %v251
        %v353 = vmul.f32 %v252, %v252
        %v354 = vadd.f32 %v350, %v351
        %v355 = vadd.f32 %v354, %v352
        %v356 = vadd.f32 %v355, %v353
        %357 = vadd.xlane.f32.xlu0 %v356
        %v358 = vpop.xlane.xlu0 %357
        %v359 = vrot.slane %v358, 4
        %v360 = vadd.f32 %v358, %v359
        %v361 = vrot.slane %v360, 2
        %v362 = vadd.f32 %v360, %v361
        %v363 = vrot.slane %v362, 1
        %v364 = vadd.f32 %v362, %v363
        %s365 = vtos %v364
        %v366 = vstv %s365
        %v367 = vadd.f32 %v349, %v366
        %vm368 = vcmask 0
        %369 = vst.msk [vmem:[%s247] sm:$0x1] %vm368, %v367
        // Predicated region
        $region41: #{tpu_custom_call.1} parent=27 // pred_check
          %p370 = pneg %p328
        $region42: #{tpu_custom_call.1} parent=27 // pred_check_branch
          %372 = sbr.rel (%p370) target = $region44
        $region43: #{tpu_custom_call.1} parent=27 // pred_region
          %v373 = vld [vmem:[%s247] sm:$0x1]
          %v374 = vmul.f32 %v373, 0.01
          %375 = vst.msk [vmem:[%s247] sm:$0x1] %vm368, %v374
        $region44: #{tpu_custom_call.1} parent=27 // pred_fallthru
          _
        %s376 = sand.u32 %s100, 1
        %s377 = scalar_lea.sflag [#allocation4], %s376
        %s378 = sand.u32 %s100, 1
        %s379 = scalar_lea.vmem [#allocation7], %s378
        %p380 = scmp.lt.s32.totalorder %s28, 1
        %s381 = scalar_select %p380, %s28, 1
        %s382 = scalar_lea.vmem %s3, %s381
        // Predicated region
        $region45: #{tpu_custom_call.1} parent=27 // pred_check
          %p383 = pneg %p110
        $region46: #{tpu_custom_call.1} parent=27 // pred_check_branch
          %385 = sbr.rel (%p383) target = $region48
        $region47: #{tpu_custom_call.1} parent=27 // pred_region
          %s387 = ssub.s32 16, 16
          %388 = vsyncadd %s377, %s387
          %s389 = sadd.s32 %s29, %s28
          %s390 = smul.addr %s389, 16
          %s391 = scalar_lea.hbm %s2, %s390
          %s393 = sshll.u32 %s379, 4
          %s394 = int_to_ptr.vmem [resolvable:$true] %s393
          %396 = dma.vmem_to_hbm [thread:$0]  %s394, 16, %s391, %s377
        $region48: #{tpu_custom_call.1} parent=27 // pred_fallthru
          _
        // Predicated region
        $region49: #{tpu_custom_call.1} parent=27 // pred_check
          %p397 = pneg %p136
        $region50: #{tpu_custom_call.1} parent=27 // pred_check_branch
          %399 = sbr.rel (%p397) target = $region52
        $region51: #{tpu_custom_call.1} parent=27 // pred_region
          _
        $region52: #{tpu_custom_call.1} parent=27 // pred_fallthru
          _
      $region28: #{tpu_custom_call.1} parent=5 // pred_fallthru
        _
      %p400 = scmp.le.s32.totalorder 2, %s19
      // Predicated region
      $region53: #{tpu_custom_call.1} parent=5 // pred_check
        %p401 = pneg %p400
      $region54: #{tpu_custom_call.1} parent=5 // pred_check_branch
        %403 = sbr.rel (%p401) target = $region56
      $region55: #{tpu_custom_call.1} parent=5 // pred_region
        %s404 = ssub.s32 %s19, 2
        // Predicated region
        $region57: #{tpu_custom_call.1} parent=55 // pred_check
          %p405 = pneg %p116
        $region58: #{tpu_custom_call.1} parent=55 // pred_check_branch
          %407 = sbr.rel (%p405) target = $region60
        $region59: #{tpu_custom_call.1} parent=55 // pred_region
          %s408 = sand.u32 %s101, 1
          %s409 = scalar_lea.sflag [#allocation4], %s408
          %s410 = sand.u32 %s101, 1
          %s411 = scalar_lea.vmem [#allocation7], %s410
          %412 = dma.done %s409, 16
        $region60: #{tpu_custom_call.1} parent=55 // pred_fallthru
          _
        // Predicated region
        $region61: #{tpu_custom_call.1} parent=55 // pred_check
          %p413 = pneg %p142
        $region62: #{tpu_custom_call.1} parent=55 // pred_check_branch
          %415 = sbr.rel (%p413) target = $region64
        $region63: #{tpu_custom_call.1} parent=55 // pred_region
          %p416 = scmp.lt.s32.totalorder %s30, 1
          %s417 = scalar_select %p416, %s30, 1
          %s418 = scalar_lea.vmem %s3, %s417
        $region64: #{tpu_custom_call.1} parent=55 // pred_fallthru
          _
      $region56: #{tpu_custom_call.1} parent=5 // pred_fallthru
        _
    $region6: #{tpu_custom_call.1} parent=1 // loop_footer
      %s23 = sadd.s32 1, %s19
    $region7: #{tpu_custom_call.1} parent=1 // loop_footer_branch
      %18 = sbr.rel target = $region3
    $region8: #{tpu_custom_call.1} parent=1 // loop_exit
      _
    %419 = vsyncpa [#allocation3], 1
    %s420 = scalar_lea.sflag [#allocation3], 1
    %421 = vsyncpa %s420, 1
    %422 = vsyncpa [#allocation6], 1
    %s423 = scalar_lea.sflag [#allocation6], 1
    %424 = vsyncpa %s423, 1
    %425 = vsyncpa [#allocation4], 1
    %s426 = scalar_lea.sflag [#allocation4], 1
    %427 = vsyncpa %s426, 1

</llo_original>
